<compile_context>
chip_gen: v7x
topology: tpu7x:2x2x1
jax: 0.10.0
libtpu: 0.0.40
codegen_flags: <defaults>
</compile_context>

<pallas_src>
import jax
import jax.numpy as jnp
from jax import lax
from jax.experimental import pallas as pl
from jax.experimental.pallas import tpu as pltpu

BETA = 0.6065        # gaussian_overlap_loss default
ALPHA = 0.01         # leaky-relu negative slope
LAMB = 1e-4          # eigenvalue regularizer weight (module default)
LOSS_WEIGHT = 1.0    # module default
EPS = 1e-7
# Loss contributed by one self-pair (coef == 1): leaky_relu(1-beta) + beta*alpha.
DIAG_CONST = (1.0 - BETA) + BETA * ALPHA


def _make_overlap_kernel(n_valid, tile, strip):
    """Builds the tile kernel; n_valid / tile / strip are trace-time constants."""
    n_strips = tile // strip

    def kernel(ib_ref, jb_ref, fi_ref, fj_ref, out_ref):
        # ib_ref/jb_ref : SMEM int32 lists (scalar prefetch) of row/col block ids.
        # fi_ref        : (TILE, 8) i-side features  -> (STRIP, 1) column vectors.
        # fj_ref        : (8, TILE) j-side features  -> (1, TILE) lane-dense rows.
        # out_ref       : (1, 8, 128) partial-sum block.
        # Channels: 0:x 1:y 2:.5*s00 3:.5*s01 4:.5*s11 5:det^(1/4)  (6,7 unused)
        t = pl.program_id(0)
        ib = ib_ref[t]
        jb = jb_ref[t]

        # j-side rows (loop invariant; broadcast along sublanes / i axis)
        x_j = fj_ref[0:1, :]
        y_j = fj_ref[1:2, :]
        a_j = fj_ref[2:3, :]
        b_j = fj_ref[3:4, :]
        d_j = fj_ref[4:5, :]
        q_j = fj_ref[5:6, :]

        def strip_body(s, acc):
            r0 = pl.multiple_of(s * strip, strip)
            fs = fi_ref[pl.ds(r0, strip), :]          # (STRIP, 8)
            x_i = fs[:, 0:1]
            y_i = fs[:, 1:2]
            a_i = fs[:, 2:3]
            b_i = fs[:, 3:4]
            d_i = fs[:, 4:5]
            q_i = fs[:, 5:6]

            # Sigma_M = (Sigma_i + Sigma_j) / 2  (channels are pre-halved; b == c)
            aM = a_i + a_j                            # (STRIP, TILE)
            bM = b_i + b_j
            dM = d_i + d_j
            detM = aM * dM - bM * bM
            rsq = lax.rsqrt(jnp.maximum(detM, EPS))   # single EUP rsqrt
            inv_detM = rsq * rsq

            dx = x_j - x_i
            dy = y_j - y_i
            # dxy^T Sigma_M^{-1} dxy via the 2x2 adjugate (symmetric fold: b+c = 2b)
            quad = (dM * (dx * dx) + aM * (dy * dy)
                    - 2.0 * (bM * (dx * dy))) * inv_detM
            # coef = exp(-quad/8) * sqrt( sqrt(det_i*det_j) / detM ); q=0 for padding
            coef = jnp.exp(-0.125 * quad) * ((q_i * q_j) * rsq)

            # leaky_relu(coef - beta, alpha) + beta*alpha; padded pairs -> exactly 0
            z = coef - BETA
            loss = jnp.maximum(z, ALPHA * z) + BETA * ALPHA
            return acc + jnp.sum(loss)

        tile_sum = lax.fori_loop(0, n_strips, strip_body, jnp.float32(0.0))

        @pl.when(ib == jb)
        def _():
            # diagonal tile: remove the self-pair contributions analytically
            n_diag = jnp.clip(n_valid - ib * tile, 0, tile).astype(jnp.float32)
            out_ref[...] = jnp.full(out_ref.shape,
                                    tile_sum - DIAG_CONST * n_diag, jnp.float32)

        @pl.when(ib != jb)
        def _():
            # strictly-upper tile: mirror tile (jb, ib) is never visited -> double it
            out_ref[...] = jnp.full(out_ref.shape, 2.0 * tile_sum, jnp.float32)

    return kernel


def gaussian_overlap_loss_pallas(mu, sigma, max_tile=1024, strip=128):
    """mu: (N, 2) f32, sigma: (N, 2, 2) f32 (symmetric) -> scalar loss ('mean').

    VMEM per grid step ~ (TILE*512 + 8*TILE*4) * 2 (double-buffered I/O blocks)
    + ~10 live (STRIP, TILE) f32 temporaries; at TILE=1024 / STRIP=128 that is
    ~6-7 MiB, comfortably inside the 32 MiB scoped limit on v5e/v6e/v7x.
    """
    N = mu.shape[0]
    mu = mu.astype(jnp.float32)
    sig = sigma.astype(jnp.float32).reshape(N, 4)
    s00, s01, s10, s11 = sig[:, 0], sig[:, 1], sig[:, 2], sig[:, 3]

    # ---- O(N) eigenvalue regularizer (closed-form symmetric 2x2 eigh) --------------
    tm = 0.5 * (s00 + s11)
    hd = 0.5 * (s00 - s11)
    off = s10
    disc = jnp.sqrt(hd * hd + off * off)
    e1 = jnp.sqrt(jnp.maximum(tm - disc, EPS))
    e2 = jnp.sqrt(jnp.maximum(tm + disc, EPS))
    loss_lamb = LAMB * 0.5 * (jnp.mean(jnp.log1p(jnp.abs(e1)))
                              + jnp.mean(jnp.log1p(jnp.abs(e2))))

    # ---- small-N aware tile choice ---------------------------------------------------
    def _round_up(v, m):
        return ((v + m - 1) // m) * m

    tile = max(128, min(max_tile, _round_up(N, 128)))
    strip = min(strip, tile)
    if tile % strip:
        strip = 128  # tile is always a multiple of 128

    # ---- packed lane-dense feature slabs (O(N) glue) --------------------------------
    det = s00 * s11 - s01 * s10
    q = jnp.sqrt(jnp.sqrt(jnp.maximum(det, EPS)))          # det^(1/4)
    zeros = jnp.zeros((N,), jnp.float32)
    feat = jnp.stack([mu[:, 0], mu[:, 1],
                      0.5 * s00, 0.25 * (s01 + s10), 0.5 * s11,
                      q, zeros, zeros], axis=0)            # (8, N)

    n_pad = _round_up(N, tile)
    pad = n_pad - N
    if pad:
        # padded Gaussians: identity covariance (finite detM), q = 0 -> loss exactly 0
        pad_col = jnp.array([0., 0., 0.5, 0., 0.5, 0., 0., 0.],
                            jnp.float32)[:, None]
        feat_j = jnp.concatenate([feat, jnp.broadcast_to(pad_col, (8, pad))], axis=1)
    else:
        feat_j = feat
    feat_i = feat_j.T                                       # (N_pad, 8)

    # ---- upper-triangular tile enumeration ------------------------------------------
    nb = n_pad // tile
    ib_list, jb_list = [], []
    for i in range(nb):
        for j in range(i, nb):
            ib_list.append(i)
            jb_list.append(j)
    num_tiles = len(ib_list)
    ib_arr = jnp.asarray(ib_list, dtype=jnp.int32)
    jb_arr = jnp.asarray(jb_list, dtype=jnp.int32)

    kernel = _make_overlap_kernel(N, tile, strip)

    grid_spec = pltpu.PrefetchScalarGridSpec(
        num_scalar_prefetch=2,
        grid=(num_tiles,),
        in_specs=[
            pl.BlockSpec((tile, 8), lambda t, ib, jb: (ib[t], 0)),   # feat_i rows
            pl.BlockSpec((8, tile), lambda t, ib, jb: (0, jb[t])),   # feat_j cols
        ],
        out_specs=pl.BlockSpec((1, 8, 128), lambda t, ib, jb: (t, 0, 0)),
    )

    partials = pl.pallas_call(
        kernel,
        out_shape=jax.ShapeDtypeStruct((num_tiles, 8, 128), jnp.float32),
        grid_spec=grid_spec,
        compiler_params=pltpu.CompilerParams(
            dimension_semantics=("parallel",),   # independent tiles -> megacore on v7x
            vmem_limit_bytes=32 * 1024 * 1024,
        ),
    )(ib_arr, jb_arr, feat_i, feat_j)

    overlap = jnp.sum(partials[:, 0, 0]) / N     # .sum(-1) then mean over N rows
    return LOSS_WEIGHT * (loss_lamb + overlap)


def _reference(mu, sigma):
    """Pure-JAX mirror of the PyTorch forward (reduction='mean')."""
    N = mu.shape[0]
    L = jnp.sqrt(jnp.clip(jnp.linalg.eigvalsh(sigma), 1e-7))
    loss_lamb = LAMB * jnp.mean(jnp.log1p(jnp.abs(L)))

    mu0 = jnp.broadcast_to(mu[None], (N, N, 2))
    sg0 = jnp.broadcast_to(sigma[None], (N, N, 2, 2))
    mu1 = jnp.broadcast_to(mu[:, None], (N, N, 2))
    sg1 = jnp.broadcast_to(sigma[:, None], (N, N, 2, 2))
    Sigma_M = (sg0 + sg1) / 2
    dxy = (mu0 - mu1)[..., None]
    sol = jnp.linalg.solve(Sigma_M, dxy)
    t0 = jnp.exp(-0.125 * jnp.squeeze(jnp.swapaxes(dxy, -1, -2) @ sol, (-1, -2)))
    t1 = jnp.sqrt(jnp.clip(jnp.linalg.det(sg0) * jnp.linalg.det(sg1), 1e-7))
    t2 = jnp.linalg.det(Sigma_M)
    coef = t0 * jnp.sqrt(jnp.clip(t1 / t2, 1e-7))
    coef = coef * (1.0 - jnp.eye(N))
    z = coef - BETA
    loss = jnp.where(z >= 0.0, z, ALPHA * z) + BETA * ALPHA
    loss = loss.sum(-1)
    return LOSS_WEIGHT * (loss_lamb + loss.mean())


if __name__ == "__main__":
    # Small deterministic test: single 128-tile (small-N path), one strip, padding.
    key = jax.random.PRNGKey(0)
    k1, k2 = jax.random.split(key)
    N = 16
    mu = jax.random.uniform(k1, (N, 2), jnp.float32, minval=0.0, maxval=32.0)
    A = jax.random.normal(k2, (N, 2, 2), jnp.float32)
    sigma = A @ jnp.swapaxes(A, -1, -2) + 2.0 * jnp.eye(2, dtype=jnp.float32)[None]

    out = jax.block_until_ready(gaussian_overlap_loss_pallas(mu, sigma))
    ref = jax.block_until_ready(_reference(mu, sigma))
    assert jnp.allclose(out, ref, rtol=1e-3, atol=1e-5), (float(out), float(ref))

    # Multi-tile test: triangular doubling, analytic diagonal correction, padding,
    # and the 2-strip inner loop (tile=256, strip=128).
    k3, k4 = jax.random.split(jax.random.PRNGKey(1))
    N2 = 600
    mu2 = jax.random.uniform(k3, (N2, 2), jnp.float32, minval=0.0, maxval=64.0)
    A2 = jax.random.normal(k4, (N2, 2, 2), jnp.float32)
    sigma2 = A2 @ jnp.swapaxes(A2, -1, -2) + 2.0 * jnp.eye(2, dtype=jnp.float32)[None]
    ref2 = jax.block_until_ready(_reference(mu2, sigma2))

    out2 = jax.block_until_ready(gaussian_overlap_loss_pallas(mu2, sigma2, max_tile=256))
    assert jnp.allclose(out2, ref2, rtol=1e-3, atol=1e-5), (float(out2), float(ref2))

    # Default path for the same data: single 640-wide tile, 5 strips.
    out3 = jax.block_until_ready(gaussian_overlap_loss_pallas(mu2, sigma2))
    assert jnp.allclose(out3, ref2, rtol=1e-3, atol=1e-5), (float(out3), float(ref2))

    print("KERNEL_OK")
</pallas_src>

<mosaic_0001>
module attributes {stable_mosaic.version = 11 : i64} {
  func.func @kernel(%arg0: i32, %arg1: memref<1xi32, #tpu.memory_space<smem>>, %arg2: memref<1xi32, #tpu.memory_space<smem>>, %arg3: memref<128x8xf32, #tpu.memory_space<vmem>>, %arg4: memref<8x128xf32, #tpu.memory_space<vmem>>, %arg5: memref<1x8x128xf32, #tpu.memory_space<vmem>>) attributes {dimension_semantics = [#tpu.dimension_semantics<parallel>], iteration_bounds = array<i64: 1>, scalar_prefetch = 2 : i64, scratch_operands = 0 : i64, tpu.core_type = #tpu.core_type<tc>, window_params = [{transform_indices = @transform_0, window_bounds = array<i64: 128, 8>}, {transform_indices = @transform_1, window_bounds = array<i64: 8, 128>}, {transform_indices = @transform_2, window_bounds = array<i64: 1, 8, 128>}]} {
    %0 = arith.index_cast %arg0 : i32 to index
    %1 = memref.load %arg1[%0] : memref<1xi32, #tpu.memory_space<smem>>
    %2 = arith.index_cast %arg0 : i32 to index
    %3 = memref.load %arg2[%2] : memref<1xi32, #tpu.memory_space<smem>>
    %c0 = arith.constant 0 : index
    %c0_0 = arith.constant 0 : index
    %4 = vector.load %arg4[%c0, %c0_0] : memref<8x128xf32, #tpu.memory_space<vmem>>, vector<1x128xf32>
    %c1 = arith.constant 1 : index
    %c0_1 = arith.constant 0 : index
    %5 = vector.load %arg4[%c1, %c0_1] : memref<8x128xf32, #tpu.memory_space<vmem>>, vector<1x128xf32>
    %c2 = arith.constant 2 : index
    %c0_2 = arith.constant 0 : index
    %6 = vector.load %arg4[%c2, %c0_2] : memref<8x128xf32, #tpu.memory_space<vmem>>, vector<1x128xf32>
    %c3 = arith.constant 3 : index
    %c0_3 = arith.constant 0 : index
    %7 = vector.load %arg4[%c3, %c0_3] : memref<8x128xf32, #tpu.memory_space<vmem>>, vector<1x128xf32>
    %c4 = arith.constant 4 : index
    %c0_4 = arith.constant 0 : index
    %8 = vector.load %arg4[%c4, %c0_4] : memref<8x128xf32, #tpu.memory_space<vmem>>, vector<1x128xf32>
    %c5 = arith.constant 5 : index
    %c0_5 = arith.constant 0 : index
    %9 = vector.load %arg4[%c5, %c0_5] : memref<8x128xf32, #tpu.memory_space<vmem>>, vector<1x128xf32>
    %cst = arith.constant 0.000000e+00 : f32
    %c0_i32 = arith.constant 0 : i32
    %c128_i32 = arith.constant 128 : i32
    %10 = arith.muli %c0_i32, %c128_i32 : i32
    %11 = tpu.assume_multiple %10, 128 : i32
    %12 = arith.index_cast %11 : i32 to index
    %c0_6 = arith.constant 0 : index
    %13 = vector.load %arg3[%12, %c0_6] : memref<128x8xf32, #tpu.memory_space<vmem>>, vector<128x8xf32>
    %14 = vector.extract_strided_slice %13 {offsets = [0, 0], sizes = [128, 1], strides = [1, 1]} : vector<128x8xf32> to vector<128x1xf32>
    %15 = vector.extract_strided_slice %13 {offsets = [0, 1], sizes = [128, 1], strides = [1, 1]} : vector<128x8xf32> to vector<128x1xf32>
    %16 = vector.extract_strided_slice %13 {offsets = [0, 2], sizes = [128, 1], strides = [1, 1]} : vector<128x8xf32> to vector<128x1xf32>
    %17 = vector.extract_strided_slice %13 {offsets = [0, 3], sizes = [128, 1], strides = [1, 1]} : vector<128x8xf32> to vector<128x1xf32>
    %18 = vector.extract_strided_slice %13 {offsets = [0, 4], sizes = [128, 1], strides = [1, 1]} : vector<128x8xf32> to vector<128x1xf32>
    %19 = vector.extract_strided_slice %13 {offsets = [0, 5], sizes = [128, 1], strides = [1, 1]} : vector<128x8xf32> to vector<128x1xf32>
    %20 = vector.broadcast %16 : vector<128x1xf32> to vector<128x128xf32>
    %21 = vector.broadcast %6 : vector<1x128xf32> to vector<128x128xf32>
    %22 = arith.addf %20, %21 : vector<128x128xf32>
    %23 = vector.broadcast %17 : vector<128x1xf32> to vector<128x128xf32>
    %24 = vector.broadcast %7 : vector<1x128xf32> to vector<128x128xf32>
    %25 = arith.addf %23, %24 : vector<128x128xf32>
    %26 = vector.broadcast %18 : vector<128x1xf32> to vector<128x128xf32>
    %27 = vector.broadcast %8 : vector<1x128xf32> to vector<128x128xf32>
    %28 = arith.addf %26, %27 : vector<128x128xf32>
    %29 = arith.mulf %22, %28 : vector<128x128xf32>
    %30 = arith.mulf %25, %25 : vector<128x128xf32>
    %31 = arith.subf %29, %30 : vector<128x128xf32>
    %cst_7 = arith.constant 1.000000e-07 : f32
    %32 = vector.broadcast %cst_7 : f32 to vector<128x128xf32>
    %33 = arith.maximumf %31, %32 : vector<128x128xf32>
    %34 = math.rsqrt %33 : vector<128x128xf32>
    %35 = arith.mulf %34, %34 : vector<128x128xf32>
    %36 = vector.broadcast %4 : vector<1x128xf32> to vector<128x128xf32>
    %37 = vector.broadcast %14 : vector<128x1xf32> to vector<128x128xf32>
    %38 = arith.subf %36, %37 : vector<128x128xf32>
    %39 = vector.broadcast %5 : vector<1x128xf32> to vector<128x128xf32>
    %40 = vector.broadcast %15 : vector<128x1xf32> to vector<128x128xf32>
    %41 = arith.subf %39, %40 : vector<128x128xf32>
    %42 = arith.mulf %38, %38 : vector<128x128xf32>
    %43 = arith.mulf %28, %42 : vector<128x128xf32>
    %44 = arith.mulf %41, %41 : vector<128x128xf32>
    %45 = arith.mulf %22, %44 : vector<128x128xf32>
    %46 = arith.addf %43, %45 : vector<128x128xf32>
    %47 = arith.mulf %38, %41 : vector<128x128xf32>
    %48 = arith.mulf %25, %47 : vector<128x128xf32>
    %cst_8 = arith.constant 2.000000e+00 : f32
    %49 = vector.broadcast %cst_8 : f32 to vector<128x128xf32>
    %50 = arith.mulf %49, %48 : vector<128x128xf32>
    %51 = arith.subf %46, %50 : vector<128x128xf32>
    %52 = arith.mulf %51, %35 : vector<128x128xf32>
    %cst_9 = arith.constant -1.250000e-01 : f32
    %53 = vector.broadcast %cst_9 : f32 to vector<128x128xf32>
    %54 = arith.mulf %53, %52 : vector<128x128xf32>
    %55 = math.exp %54 : vector<128x128xf32>
    %56 = vector.broadcast %19 : vector<128x1xf32> to vector<128x128xf32>
    %57 = vector.broadcast %9 : vector<1x128xf32> to vector<128x128xf32>
    %58 = arith.mulf %56, %57 : vector<128x128xf32>
    %59 = arith.mulf %58, %34 : vector<128x128xf32>
    %60 = arith.mulf %55, %59 : vector<128x128xf32>
    %cst_10 = arith.constant 6.065000e-01 : f32
    %61 = vector.broadcast %cst_10 : f32 to vector<128x128xf32>
    %62 = arith.subf %60, %61 : vector<128x128xf32>
    %cst_11 = arith.constant 0.00999999977 : f32
    %63 = vector.broadcast %cst_11 : f32 to vector<128x128xf32>
    %64 = arith.mulf %63, %62 : vector<128x128xf32>
    %65 = arith.maximumf %62, %64 : vector<128x128xf32>
    %cst_12 = arith.constant 6.065000e-03 : f32
    %66 = vector.broadcast %cst_12 : f32 to vector<128x128xf32>
    %67 = arith.addf %65, %66 : vector<128x128xf32>
    %68 = vector.shape_cast %67 : vector<128x128xf32> to vector<1x128x128xf32>
    %cst_13 = arith.constant dense<0.000000e+00> : vector<1xf32>
    %69 = vector.multi_reduction <add>, %68, %cst_13 [1, 2] : vector<1x128x128xf32> to vector<1xf32>
    %70 = vector.shape_cast %69 : vector<1xf32> to vector<1x1x1xf32>
    %71 = vector.extract %70[0, 0, 0] : f32 from vector<1x1x1xf32>
    %72 = arith.addf %cst, %71 : f32
    %c1_i32 = arith.constant 1 : i32
    %73 = arith.cmpi eq, %1, %3 : i32
    %74 = arith.extui %73 : i1 to i32
    %c0_i32_14 = arith.constant 0 : i32
    %75 = arith.cmpi ne, %74, %c0_i32_14 : i32
    scf.if %75 {
      %c128_i32_16 = arith.constant 128 : i32
      %79 = arith.muli %1, %c128_i32_16 : i32
      %c16_i32 = arith.constant 16 : i32
      %80 = arith.subi %c16_i32, %79 : i32
      %c0_i32_17 = arith.constant 0 : i32
      %c128_i32_18 = arith.constant 128 : i32
      %81 = arith.maxsi %c0_i32_17, %80 : i32
      %82 = arith.minsi %c128_i32_18, %81 : i32
      %83 = arith.sitofp %82 : i32 to f32
      %cst_19 = arith.constant 3.995650e-01 : f32
      %84 = arith.mulf %cst_19, %83 : f32
      %85 = arith.subf %72, %84 : f32
      %86 = vector.broadcast %85 : f32 to vector<1x8x128xf32>
      %c0_20 = arith.constant 0 : index
      %c0_21 = arith.constant 0 : index
      %c0_22 = arith.constant 0 : index
      %87 = vector.load %arg5[%c0_20, %c0_21, %c0_22] : memref<1x8x128xf32, #tpu.memory_space<vmem>>, vector<1x8x128xf32>
      tpu.vector_store %arg5[%c0_20, %c0_21, %c0_22], %86 {strides = array<i32>} : memref<1x8x128xf32, #tpu.memory_space<vmem>>, vector<1x8x128xf32>,
    } else {
    }
    %76 = arith.cmpi ne, %1, %3 : i32
    %77 = arith.extui %76 : i1 to i32
    %c0_i32_15 = arith.constant 0 : i32
    %78 = arith.cmpi ne, %77, %c0_i32_15 : i32
    scf.if %78 {
      %cst_16 = arith.constant 2.000000e+00 : f32
      %79 = arith.mulf %cst_16, %72 : f32
      %80 = vector.broadcast %79 : f32 to vector<1x8x128xf32>
      %c0_17 = arith.constant 0 : index
      %c0_18 = arith.constant 0 : index
      %c0_19 = arith.constant 0 : index
      %81 = vector.load %arg5[%c0_17, %c0_18, %c0_19] : memref<1x8x128xf32, #tpu.memory_space<vmem>>, vector<1x8x128xf32>
      tpu.vector_store %arg5[%c0_17, %c0_18, %c0_19], %80 {strides = array<i32>} : memref<1x8x128xf32, #tpu.memory_space<vmem>>, vector<1x8x128xf32>,
    } else {
    }
    return
  }
  func.func @transform_0(%arg0: i32, %arg1: memref<1xi32, #tpu.memory_space<smem>>, %arg2: memref<1xi32, #tpu.memory_space<smem>>) -> (i32, i32) {
    %0 = arith.index_cast %arg0 : i32 to index
    %1 = memref.load %arg1[%0] : memref<1xi32, #tpu.memory_space<smem>>
    %c0_i32 = arith.constant 0 : i32
    %c0_i32_0 = arith.constant 0 : i32
    return %1, %c0_i32 : i32, i32
  }
  func.func @transform_1(%arg0: i32, %arg1: memref<1xi32, #tpu.memory_space<smem>>, %arg2: memref<1xi32, #tpu.memory_space<smem>>) -> (i32, i32) {
    %0 = arith.index_cast %arg0 : i32 to index
    %1 = memref.load %arg2[%0] : memref<1xi32, #tpu.memory_space<smem>>
    %c0_i32 = arith.constant 0 : i32
    %c0_i32_0 = arith.constant 0 : i32
    return %c0_i32, %1 : i32, i32
  }
  func.func @transform_2(%arg0: i32, %arg1: memref<1xi32, #tpu.memory_space<smem>>, %arg2: memref<1xi32, #tpu.memory_space<smem>>) -> (i32, i32, i32) {
    %c0_i32 = arith.constant 0 : i32
    %c0_i32_0 = arith.constant 0 : i32
    %c0_i32_1 = arith.constant 0 : i32
    return %arg0, %c0_i32, %c0_i32_0 : i32, i32, i32
  }
}

</mosaic_0001>

<llo_original>
// kernel: tpu_custom_call.1
$region0: #{tpu_custom_call.1}
  #allocation0 [shape = 'u32[]', space=smem, size = 0x4, offset = 0x4, fixed_abs, tag = 'smem constant byte address 0x4 - core index']
  #allocation1 [shape = 'u32[144,128]{1,0:T(1,128)}', space=vmem, size = 0x12000, scoped, tag = 'internal scratch']
  #allocation2 [shape = 's32[1]{0}', space=sflag, size = 0x4, scoped, tag = 'scoped memory for tpu_custom_call.1']
  #allocation3 [shape = 's32[1]{0:T(128)S(6)}', space=smem, size = 0x200, scoped, tag = 'prefetched SMEM operand 0']
  #allocation4 [shape = 's32[1]{0:T(128)S(6)}', space=smem, size = 0x200, scoped, tag = 'prefetched SMEM operand 1']
  %s0 = inlined_call_operand.<no memory space> [shape: s32[1], index: 0, kind: input, shape index: {}]
  %s1 = inlined_call_operand.<no memory space> [shape: s32[1], index: 1, kind: input, shape index: {}]
  %s2 = inlined_call_operand.vmem [shape: f32[128,8], index: 2, kind: input, shape index: {}]
  %s3 = inlined_call_operand.vmem [shape: f32[8,128], index: 3, kind: input, shape index: {}]
  %s4 = inlined_call_operand.hbm [shape: f32[1,8,128], index: 4, kind: output, shape index: {}]
  %s5 = sld [smem:[#allocation0]]
  $region26: #{tpu_custom_call.1} parent=0
    _
  %s7 = ssub.s32 1, %s5
  %s8 = scalar_select 0, %s7, %s5
  %9 = sst [smem:[#allocation3]] %s0
  %10 = sst [smem:[#allocation4]] %s1
  $region1: #{tpu_custom_call.1} parent=0
    #allocation5 [shape = 'u8[4096]{0}', space=vmem, size = 0x1000, scoped, tag = 'output window, operand 0, single buffered']
    #allocation6 [shape = 's32[1]{0}', space=sflag, size = 0x4, scoped, tag = 'scoped memory for tpu_custom_call.1']
    %11 = vsyncpa [#allocation6], 0
    // Predicated region
    $region2: #{tpu_custom_call.1} parent=1 // pred_check
      _
    $region3: #{tpu_custom_call.1} parent=1 // pred_check_branch
      %13 = sbr.rel (0) target = $region5
    $region4: #{tpu_custom_call.1} parent=1 // pred_region
      %s14 = sld [smem:[#allocation3]]
      %s15 = smul.u32 16, %s14
      %p16 = scmp.lt.s32.totalorder %s15, 15
      %s17 = scalar_select %p16, %s15, 15
      %s18 = smul.addr %s17, 8
      %s19 = scalar_lea.vmem %s2, %s18
      %s20 = sld [smem:[#allocation3]]
      %s21 = smul.u32 16, %s20
    $region5: #{tpu_custom_call.1} parent=1 // pred_fallthru
      _
    // Predicated region
    $region6: #{tpu_custom_call.1} parent=1 // pred_check
      _
    $region7: #{tpu_custom_call.1} parent=1 // pred_check_branch
      %23 = sbr.rel (0) target = $region9
    $region8: #{tpu_custom_call.1} parent=1 // pred_region
      %s24 = sld [smem:[#allocation4]]
      %p25 = scmp.lt.s32.totalorder %s24, 0
      %s26 = scalar_select %p25, %s24, 0
      %s27 = smul.addr %s26, 8
      %s28 = scalar_lea.vmem %s3, %s27
      %s29 = sld [smem:[#allocation4]]
    $region9: #{tpu_custom_call.1} parent=1 // pred_fallthru
      _
    %s30 = sld [smem:[#allocation3]]
    %s31 = smul.u32 16, %s30
    %p32 = scmp.lt.s32.totalorder %s31, 15
    %s33 = scalar_select %p32, %s31, 15
    %s34 = smul.addr %s33, 8
    %s35 = scalar_lea.vmem %s2, %s34
    %s36 = sld [smem:[#allocation4]]
    %p37 = scmp.lt.s32.totalorder %s36, 0
    %s38 = scalar_select %p37, %s36, 0
    %s39 = smul.addr %s38, 8
    %s40 = scalar_lea.vmem %s3, %s39
    %s41 = sld [smem:[#allocation3]]
    %s42 = smul.u32 16, %s41
    %p43 = scmp.lt.s32.totalorder %s42, 15
    %s44 = scalar_select %p43, %s42, 15
    %s45 = smul.addr %s44, 8
    %s46 = scalar_lea.vmem %s2, %s45
    %s47 = sld [smem:[#allocation3]]
    %s48 = smul.u32 16, %s47
    %s49 = sld [smem:[#allocation4]]
    %p50 = scmp.lt.s32.totalorder %s49, 0
    %s51 = scalar_select %p50, %s49, 0
    %s52 = smul.addr %s51, 8
    %s53 = scalar_lea.vmem %s3, %s52
    %s54 = sld [smem:[#allocation4]]
    %s55 = sld [smem:[#allocation3]]
    %s56 = sld [smem:[#allocation4]]
    %v57 = vld [vmem:[%s53] sm:$0x1]
    %v58 = vld [vmem:[%s53 + $0x1] sm:$0x1]
    %v59 = vld [vmem:[%s53 + $0x2] sm:$0x1]
    %v60 = vld [vmem:[%s53 + $0x3] sm:$0x1]
    %v61 = vld [vmem:[%s53 + $0x4] sm:$0x1]
    %v62 = vld [vmem:[%s53 + $0x5] sm:$0x1]
    %v63 = vld [vmem:[%s46] sm:$0xff]
    %v64 = vld [vmem:[%s46 + $0x8] sm:$0xff]
    %v65 = vld [vmem:[%s46 + $0x10] sm:$0xff]
    %v66 = vld [vmem:[%s46 + $0x18] sm:$0xff]
    %v67 = vld [vmem:[%s46 + $0x20] sm:$0xff]
    %v68 = vld [vmem:[%s46 + $0x28] sm:$0xff]
    %v69 = vld [vmem:[%s46 + $0x30] sm:$0xff]
    %v70 = vld [vmem:[%s46 + $0x38] sm:$0xff]
    %v71 = vld [vmem:[%s46 + $0x40] sm:$0xff]
    %v72 = vld [vmem:[%s46 + $0x48] sm:$0xff]
    %v73 = vld [vmem:[%s46 + $0x50] sm:$0xff]
    %v74 = vld [vmem:[%s46 + $0x58] sm:$0xff]
    %v75 = vld [vmem:[%s46 + $0x60] sm:$0xff]
    %v76 = vld [vmem:[%s46 + $0x68] sm:$0xff]
    %v77 = vld [vmem:[%s46 + $0x70] sm:$0xff]
    %v78 = vld [vmem:[%s46 + $0x78] sm:$0xff]
    %80 = vset.pattern.permute.xlu0 2
    %81 = vperm.xlu0 %80, %v63
    %v82 = vpop.permute.xlu0 %81
    %85 = vset.pattern.permute.xlu0 2
    %86 = vperm.xlu0 %85, %v64
    %v87 = vpop.permute.xlu0 %86
    %90 = vset.pattern.permute.xlu0 2
    %91 = vperm.xlu0 %90, %v65
    %v92 = vpop.permute.xlu0 %91
    %95 = vset.pattern.permute.xlu0 2
    %96 = vperm.xlu0 %95, %v66
    %v97 = vpop.permute.xlu0 %96
    %100 = vset.pattern.permute.xlu0 2
    %101 = vperm.xlu0 %100, %v67
    %v102 = vpop.permute.xlu0 %101
    %105 = vset.pattern.permute.xlu0 2
    %106 = vperm.xlu0 %105, %v68
    %v107 = vpop.permute.xlu0 %106
    %110 = vset.pattern.permute.xlu0 2
    %111 = vperm.xlu0 %110, %v69
    %v112 = vpop.permute.xlu0 %111
    %115 = vset.pattern.permute.xlu0 2
    %116 = vperm.xlu0 %115, %v70
    %v117 = vpop.permute.xlu0 %116
    %120 = vset.pattern.permute.xlu0 2
    %121 = vperm.xlu0 %120, %v71
    %v122 = vpop.permute.xlu0 %121
    %125 = vset.pattern.permute.xlu0 2
    %126 = vperm.xlu0 %125, %v72
    %v127 = vpop.permute.xlu0 %126
    %130 = vset.pattern.permute.xlu0 2
    %131 = vperm.xlu0 %130, %v73
    %v132 = vpop.permute.xlu0 %131
    %135 = vset.pattern.permute.xlu0 2
    %136 = vperm.xlu0 %135, %v74
    %v137 = vpop.permute.xlu0 %136
    %140 = vset.pattern.permute.xlu0 2
    %141 = vperm.xlu0 %140, %v75
    %v142 = vpop.permute.xlu0 %141
    %145 = vset.pattern.permute.xlu0 2
    %146 = vperm.xlu0 %145, %v76
    %v147 = vpop.permute.xlu0 %146
    %150 = vset.pattern.permute.xlu0 2
    %151 = vperm.xlu0 %150, %v77
    %v152 = vpop.permute.xlu0 %151
    %155 = vset.pattern.permute.xlu0 2
    %156 = vperm.xlu0 %155, %v78
    %v157 = vpop.permute.xlu0 %156
    %v159 = vlaneseq
    %v160 = vshrl.u32 %v159, 7
    %v161 = vsub.s32 0, %v160
    %v162 = vrot.slane %v59, %v161
    %v163 = vadd.f32 %v82, %v162
    %v164 = vadd.f32 %v87, %v162
    %v165 = vadd.f32 %v92, %v162
    %v166 = vadd.f32 %v97, %v162
    %v167 = vadd.f32 %v102, %v162
    %v168 = vadd.f32 %v107, %v162
    %v169 = vadd.f32 %v112, %v162
    %v170 = vadd.f32 %v117, %v162
    %v171 = vadd.f32 %v122, %v162
    %v172 = vadd.f32 %v127, %v162
    %v173 = vadd.f32 %v132, %v162
    %v174 = vadd.f32 %v137, %v162
    %v175 = vadd.f32 %v142, %v162
    %v176 = vadd.f32 %v147, %v162
    %v177 = vadd.f32 %v152, %v162
    %v178 = vadd.f32 %v157, %v162
    %179 = vset.pattern.permute.xlu0 3
    %180 = vperm.xlu0 %179, %v63
    %v181 = vpop.permute.xlu0 %180
    %183 = vset.pattern.permute.xlu0 3
    %184 = vperm.xlu0 %183, %v64
    %v185 = vpop.permute.xlu0 %184
    %187 = vset.pattern.permute.xlu0 3
    %188 = vperm.xlu0 %187, %v65
    %v189 = vpop.permute.xlu0 %188
    %191 = vset.pattern.permute.xlu0 3
    %192 = vperm.xlu0 %191, %v66
    %v193 = vpop.permute.xlu0 %192
    %195 = vset.pattern.permute.xlu0 3
    %196 = vperm.xlu0 %195, %v67
    %v197 = vpop.permute.xlu0 %196
    %199 = vset.pattern.permute.xlu0 3
    %200 = vperm.xlu0 %199, %v68
    %v201 = vpop.permute.xlu0 %200
    %203 = vset.pattern.permute.xlu0 3
    %204 = vperm.xlu0 %203, %v69
    %v205 = vpop.permute.xlu0 %204
    %207 = vset.pattern.permute.xlu0 3
    %208 = vperm.xlu0 %207, %v70
    %v209 = vpop.permute.xlu0 %208
    %211 = vset.pattern.permute.xlu0 3
    %212 = vperm.xlu0 %211, %v71
    %v213 = vpop.permute.xlu0 %212
    %215 = vset.pattern.permute.xlu0 3
    %216 = vperm.xlu0 %215, %v72
    %v217 = vpop.permute.xlu0 %216
    %219 = vset.pattern.permute.xlu0 3
    %220 = vperm.xlu0 %219, %v73
    %v221 = vpop.permute.xlu0 %220
    %223 = vset.pattern.permute.xlu0 3
    %224 = vperm.xlu0 %223, %v74
    %v225 = vpop.permute.xlu0 %224
    %227 = vset.pattern.permute.xlu0 3
    %228 = vperm.xlu0 %227, %v75
    %v229 = vpop.permute.xlu0 %228
    %231 = vset.pattern.permute.xlu0 3
    %232 = vperm.xlu0 %231, %v76
    %v233 = vpop.permute.xlu0 %232
    %235 = vset.pattern.permute.xlu0 3
    %236 = vperm.xlu0 %235, %v77
    %v237 = vpop.permute.xlu0 %236
    %239 = vset.pattern.permute.xlu0 3
    %240 = vperm.xlu0 %239, %v78
    %v241 = vpop.permute.xlu0 %240
    %v243 = vlaneseq
    %v244 = vshrl.u32 %v243, 7
    %v245 = vsub.s32 0, %v244
    %v246 = vrot.slane %v60, %v245
    %v247 = vadd.f32 %v181, %v246
    %v248 = vadd.f32 %v185, %v246
    %v249 = vadd.f32 %v189, %v246
    %v250 = vadd.f32 %v193, %v246
    %v251 = vadd.f32 %v197, %v246
    %v252 = vadd.f32 %v201, %v246
    %v253 = vadd.f32 %v205, %v246
    %v254 = vadd.f32 %v209, %v246
    %v255 = vadd.f32 %v213, %v246
    %v256 = vadd.f32 %v217, %v246
    %v257 = vadd.f32 %v221, %v246
    %v258 = vadd.f32 %v225, %v246
    %v259 = vadd.f32 %v229, %v246
    %v260 = vadd.f32 %v233, %v246
    %v261 = vadd.f32 %v237, %v246
    %v262 = vadd.f32 %v241, %v246
    %263 = vset.pattern.permute.xlu0 4
    %264 = vperm.xlu0 %263, %v63
    %v265 = vpop.permute.xlu0 %264
    %267 = vset.pattern.permute.xlu0 4
    %268 = vperm.xlu0 %267, %v64
    %v269 = vpop.permute.xlu0 %268
    %271 = vset.pattern.permute.xlu0 4
    %272 = vperm.xlu0 %271, %v65
    %v273 = vpop.permute.xlu0 %272
    %275 = vset.pattern.permute.xlu0 4
    %276 = vperm.xlu0 %275, %v66
    %v277 = vpop.permute.xlu0 %276
    %279 = vset.pattern.permute.xlu0 4
    %280 = vperm.xlu0 %279, %v67
    %v281 = vpop.permute.xlu0 %280
    %283 = vset.pattern.permute.xlu0 4
    %284 = vperm.xlu0 %283, %v68
    %v285 = vpop.permute.xlu0 %284
    %287 = vset.pattern.permute.xlu0 4
    %288 = vperm.xlu0 %287, %v69
    %v289 = vpop.permute.xlu0 %288
    %291 = vset.pattern.permute.xlu0 4
    %292 = vperm.xlu0 %291, %v70
    %v293 = vpop.permute.xlu0 %292
    %295 = vset.pattern.permute.xlu0 4
    %296 = vperm.xlu0 %295, %v71
    %v297 = vpop.permute.xlu0 %296
    %299 = vset.pattern.permute.xlu0 4
    %300 = vperm.xlu0 %299, %v72
    %v301 = vpop.permute.xlu0 %300
    %303 = vset.pattern.permute.xlu0 4
    %304 = vperm.xlu0 %303, %v73
    %v305 = vpop.permute.xlu0 %304
    %307 = vset.pattern.permute.xlu0 4
    %308 = vperm.xlu0 %307, %v74
    %v309 = vpop.permute.xlu0 %308
    %311 = vset.pattern.permute.xlu0 4
    %312 = vperm.xlu0 %311, %v75
    %v313 = vpop.permute.xlu0 %312
    %315 = vset.pattern.permute.xlu0 4
    %316 = vperm.xlu0 %315, %v76
    %v317 = vpop.permute.xlu0 %316
    %319 = vset.pattern.permute.xlu0 4
    %320 = vperm.xlu0 %319, %v77
    %v321 = vpop.permute.xlu0 %320
    %323 = vset.pattern.permute.xlu0 4
    %324 = vperm.xlu0 %323, %v78
    %v325 = vpop.permute.xlu0 %324
    %v327 = vlaneseq
    %v328 = vshrl.u32 %v327, 7
    %v329 = vsub.s32 0, %v328
    %v330 = vrot.slane %v61, %v329
    %v331 = vadd.f32 %v265, %v330
    %v332 = vadd.f32 %v269, %v330
    %v333 = vadd.f32 %v273, %v330
    %v334 = vadd.f32 %v277, %v330
    %v335 = vadd.f32 %v281, %v330
    %v336 = vadd.f32 %v285, %v330
    %v337 = vadd.f32 %v289, %v330
    %v338 = vadd.f32 %v293, %v330
    %v339 = vadd.f32 %v297, %v330
    %v340 = vadd.f32 %v301, %v330
    %v341 = vadd.f32 %v305, %v330
    %v342 = vadd.f32 %v309, %v330
    %v343 = vadd.f32 %v313, %v330
    %v344 = vadd.f32 %v317, %v330
    %v345 = vadd.f32 %v321, %v330
    %v346 = vadd.f32 %v325, %v330
    %v347 = vmul.f32 %v163, %v331
    %v348 = vmul.f32 %v164, %v332
    %v349 = vmul.f32 %v165, %v333
    %v350 = vmul.f32 %v166, %v334
    %v351 = vmul.f32 %v167, %v335
    %v352 = vmul.f32 %v168, %v336
    %v353 = vmul.f32 %v169, %v337
    %v354 = vmul.f32 %v170, %v338
    %v355 = vmul.f32 %v171, %v339
    %v356 = vmul.f32 %v172, %v340
    %v357 = vmul.f32 %v173, %v341
    %v358 = vmul.f32 %v174, %v342
    %v359 = vmul.f32 %v175, %v343
    %v360 = vmul.f32 %v176, %v344
    %v361 = vmul.f32 %v177, %v345
    %v362 = vmul.f32 %v178, %v346
    %v363 = vmul.f32 %v247, %v247
    %v364 = vmul.f32 %v248, %v248
    %v365 = vmul.f32 %v249, %v249
    %v366 = vmul.f32 %v250, %v250
    %v367 = vmul.f32 %v251, %v251
    %v368 = vmul.f32 %v252, %v252
    %v369 = vmul.f32 %v253, %v253
    %v370 = vmul.f32 %v254, %v254
    %v371 = vmul.f32 %v255, %v255
    %v372 = vmul.f32 %v256, %v256
    %v373 = vmul.f32 %v257, %v257
    %v374 = vmul.f32 %v258, %v258
    %v375 = vmul.f32 %v259, %v259
    %v376 = vmul.f32 %v260, %v260
    %v377 = vmul.f32 %v261, %v261
    %v378 = vmul.f32 %v262, %v262
    %v379 = vsub.f32 %v347, %v363
    %v380 = vsub.f32 %v348, %v364
    %v381 = vsub.f32 %v349, %v365
    %v382 = vsub.f32 %v350, %v366
    %v383 = vsub.f32 %v351, %v367
    %v384 = vsub.f32 %v352, %v368
    %v385 = vsub.f32 %v353, %v369
    %v386 = vsub.f32 %v354, %v370
    %v387 = vsub.f32 %v355, %v371
    %v388 = vsub.f32 %v356, %v372
    %v389 = vsub.f32 %v357, %v373
    %v390 = vsub.f32 %v358, %v374
    %v391 = vsub.f32 %v359, %v375
    %v392 = vsub.f32 %v360, %v376
    %v393 = vsub.f32 %v361, %v377
    %v394 = vsub.f32 %v362, %v378
    %v395 = vmax.f32 %v379, 1e-07
    %v396 = vmax.f32 %v380, 1e-07
    %v397 = vmax.f32 %v381, 1e-07
    %v398 = vmax.f32 %v382, 1e-07
    %v399 = vmax.f32 %v383, 1e-07
    %v400 = vmax.f32 %v384, 1e-07
    %v401 = vmax.f32 %v385, 1e-07
    %v402 = vmax.f32 %v386, 1e-07
    %v403 = vmax.f32 %v387, 1e-07
    %v404 = vmax.f32 %v388, 1e-07
    %v405 = vmax.f32 %v389, 1e-07
    %v406 = vmax.f32 %v390, 1e-07
    %v407 = vmax.f32 %v391, 1e-07
    %v408 = vmax.f32 %v392, 1e-07
    %v409 = vmax.f32 %v393, 1e-07
    %v410 = vmax.f32 %v394, 1e-07
    %v411 = vrsqrt.pop %v395
    %v412 = vrsqrt.pop %v396
    %v413 = vrsqrt.pop %v397
    %v414 = vrsqrt.pop %v398
    %v415 = vrsqrt.pop %v399
    %v416 = vrsqrt.pop %v400
    %v417 = vrsqrt.pop %v401
    %v418 = vrsqrt.pop %v402
    %v419 = vrsqrt.pop %v403
    %v420 = vrsqrt.pop %v404
    %v421 = vrsqrt.pop %v405
    %v422 = vrsqrt.pop %v406
    %v423 = vrsqrt.pop %v407
    %v424 = vrsqrt.pop %v408
    %v425 = vrsqrt.pop %v409
    %v426 = vrsqrt.pop %v410
    %v427 = vmul.f32 %v411, %v411
    %v428 = vmul.f32 %v412, %v412
    %v429 = vmul.f32 %v413, %v413
    %v430 = vmul.f32 %v414, %v414
    %v431 = vmul.f32 %v415, %v415
    %v432 = vmul.f32 %v416, %v416
    %v433 = vmul.f32 %v417, %v417
    %v434 = vmul.f32 %v418, %v418
    %v435 = vmul.f32 %v419, %v419
    %v436 = vmul.f32 %v420, %v420
    %v437 = vmul.f32 %v421, %v421
    %v438 = vmul.f32 %v422, %v422
    %v439 = vmul.f32 %v423, %v423
    %v440 = vmul.f32 %v424, %v424
    %v441 = vmul.f32 %v425, %v425
    %v442 = vmul.f32 %v426, %v426
    %v443 = vlaneseq
    %v444 = vshrl.u32 %v443, 7
    %v445 = vsub.s32 0, %v444
    %v446 = vrot.slane %v57, %v445
    %447 = vset.pattern.permute.xlu0 0
    %448 = vperm.xlu0 %447, %v63
    %v449 = vpop.permute.xlu0 %448
    %451 = vset.pattern.permute.xlu0 0
    %452 = vperm.xlu0 %451, %v64
    %v453 = vpop.permute.xlu0 %452
    %455 = vset.pattern.permute.xlu0 0
    %456 = vperm.xlu0 %455, %v65
    %v457 = vpop.permute.xlu0 %456
    %459 = vset.pattern.permute.xlu0 0
    %460 = vperm.xlu0 %459, %v66
    %v461 = vpop.permute.xlu0 %460
    %463 = vset.pattern.permute.xlu0 0
    %464 = vperm.xlu0 %463, %v67
    %v465 = vpop.permute.xlu0 %464
    %467 = vset.pattern.permute.xlu0 0
    %468 = vperm.xlu0 %467, %v68
    %v469 = vpop.permute.xlu0 %468
    %471 = vset.pattern.permute.xlu0 0
    %472 = vperm.xlu0 %471, %v69
    %v473 = vpop.permute.xlu0 %472
    %475 = vset.pattern.permute.xlu0 0
    %476 = vperm.xlu0 %475, %v70
    %v477 = vpop.permute.xlu0 %476
    %479 = vset.pattern.permute.xlu0 0
    %480 = vperm.xlu0 %479, %v71
    %v481 = vpop.permute.xlu0 %480
    %483 = vset.pattern.permute.xlu0 0
    %484 = vperm.xlu0 %483, %v72
    %v485 = vpop.permute.xlu0 %484
    %487 = vset.pattern.permute.xlu0 0
    %488 = vperm.xlu0 %487, %v73
    %v489 = vpop.permute.xlu0 %488
    %491 = vset.pattern.permute.xlu0 0
    %492 = vperm.xlu0 %491, %v74
    %v493 = vpop.permute.xlu0 %492
    %495 = vset.pattern.permute.xlu0 0
    %496 = vperm.xlu0 %495, %v75
    %v497 = vpop.permute.xlu0 %496
    %499 = vset.pattern.permute.xlu0 0
    %500 = vperm.xlu0 %499, %v76
    %v501 = vpop.permute.xlu0 %500
    %503 = vset.pattern.permute.xlu0 0
    %504 = vperm.xlu0 %503, %v77
    %v505 = vpop.permute.xlu0 %504
    %507 = vset.pattern.permute.xlu0 0
    %508 = vperm.xlu0 %507, %v78
    %v509 = vpop.permute.xlu0 %508
    %v511 = vsub.f32 %v446, %v449
    %v512 = vsub.f32 %v446, %v453
    %v513 = vsub.f32 %v446, %v457
    %v514 = vsub.f32 %v446, %v461
    %v515 = vsub.f32 %v446, %v465
    %v516 = vsub.f32 %v446, %v469
    %v517 = vsub.f32 %v446, %v473
    %v518 = vsub.f32 %v446, %v477
    %v519 = vsub.f32 %v446, %v481
    %v520 = vsub.f32 %v446, %v485
    %v521 = vsub.f32 %v446, %v489
    %v522 = vsub.f32 %v446, %v493
    %v523 = vsub.f32 %v446, %v497
    %v524 = vsub.f32 %v446, %v501
    %v525 = vsub.f32 %v446, %v505
    %v526 = vsub.f32 %v446, %v509
    %v527 = vlaneseq
    %v528 = vshrl.u32 %v527, 7
    %v529 = vsub.s32 0, %v528
    %v530 = vrot.slane %v58, %v529
    %531 = vset.pattern.permute.xlu0 1
    %532 = vperm.xlu0 %531, %v63
    %v533 = vpop.permute.xlu0 %532
    %535 = vset.pattern.permute.xlu0 1
    %536 = vperm.xlu0 %535, %v64
    %v537 = vpop.permute.xlu0 %536
    %539 = vset.pattern.permute.xlu0 1
    %540 = vperm.xlu0 %539, %v65
    %v541 = vpop.permute.xlu0 %540
    %543 = vset.pattern.permute.xlu0 1
    %544 = vperm.xlu0 %543, %v66
    %v545 = vpop.permute.xlu0 %544
    %547 = vset.pattern.permute.xlu0 1
    %548 = vperm.xlu0 %547, %v67
    %v549 = vpop.permute.xlu0 %548
    %551 = vset.pattern.permute.xlu0 1
    %552 = vperm.xlu0 %551, %v68
    %v553 = vpop.permute.xlu0 %552
    %555 = vset.pattern.permute.xlu0 1
    %556 = vperm.xlu0 %555, %v69
    %v557 = vpop.permute.xlu0 %556
    %559 = vset.pattern.permute.xlu0 1
    %560 = vperm.xlu0 %559, %v70
    %v561 = vpop.permute.xlu0 %560
    %563 = vset.pattern.permute.xlu0 1
    %564 = vperm.xlu0 %563, %v71
    %v565 = vpop.permute.xlu0 %564
    %567 = vset.pattern.permute.xlu0 1
    %568 = vperm.xlu0 %567, %v72
    %v569 = vpop.permute.xlu0 %568
    %571 = vset.pattern.permute.xlu0 1
    %572 = vperm.xlu0 %571, %v73
    %v573 = vpop.permute.xlu0 %572
    %575 = vset.pattern.permute.xlu0 1
    %576 = vperm.xlu0 %575, %v74
    %v577 = vpop.permute.xlu0 %576
    %579 = vset.pattern.permute.xlu0 1
    %580 = vperm.xlu0 %579, %v75
    %v581 = vpop.permute.xlu0 %580
    %583 = vset.pattern.permute.xlu0 1
    %584 = vperm.xlu0 %583, %v76
    %v585 = vpop.permute.xlu0 %584
    %587 = vset.pattern.permute.xlu0 1
    %588 = vperm.xlu0 %587, %v77
    %v589 = vpop.permute.xlu0 %588
    %591 = vset.pattern.permute.xlu0 1
    %592 = vperm.xlu0 %591, %v78
    %v593 = vpop.permute.xlu0 %592
    %v595 = vsub.f32 %v530, %v533
    %v596 = vsub.f32 %v530, %v537
    %v597 = vsub.f32 %v530, %v541
    %v598 = vsub.f32 %v530, %v545
    %v599 = vsub.f32 %v530, %v549
    %v600 = vsub.f32 %v530, %v553
    %v601 = vsub.f32 %v530, %v557
    %v602 = vsub.f32 %v530, %v561
    %v603 = vsub.f32 %v530, %v565
    %v604 = vsub.f32 %v530, %v569
    %v605 = vsub.f32 %v530, %v573
    %v606 = vsub.f32 %v530, %v577
    %v607 = vsub.f32 %v530, %v581
    %v608 = vsub.f32 %v530, %v585
    %v609 = vsub.f32 %v530, %v589
    %v610 = vsub.f32 %v530, %v593
    %v611 = vmul.f32 %v511, %v511
    %v612 = vmul.f32 %v512, %v512
    %v613 = vmul.f32 %v513, %v513
    %v614 = vmul.f32 %v514, %v514
    %v615 = vmul.f32 %v515, %v515
    %v616 = vmul.f32 %v516, %v516
    %v617 = vmul.f32 %v517, %v517
    %v618 = vmul.f32 %v518, %v518
    %v619 = vmul.f32 %v519, %v519
    %v620 = vmul.f32 %v520, %v520
    %v621 = vmul.f32 %v521, %v521
    %v622 = vmul.f32 %v522, %v522
    %v623 = vmul.f32 %v523, %v523
    %v624 = vmul.f32 %v524, %v524
    %v625 = vmul.f32 %v525, %v525
    %v626 = vmul.f32 %v526, %v526
    %v627 = vmul.f32 %v331, %v611
    %v628 = vmul.f32 %v332, %v612
    %v629 = vmul.f32 %v333, %v613
    %v630 = vmul.f32 %v334, %v614
    %v631 = vmul.f32 %v335, %v615
    %v632 = vmul.f32 %v336, %v616
    %v633 = vmul.f32 %v337, %v617
    %v634 = vmul.f32 %v338, %v618
    %v635 = vmul.f32 %v339, %v619
    %v636 = vmul.f32 %v340, %v620
    %v637 = vmul.f32 %v341, %v621
    %v638 = vmul.f32 %v342, %v622
    %v639 = vmul.f32 %v343, %v623
    %v640 = vmul.f32 %v344, %v624
    %v641 = vmul.f32 %v345, %v625
    %v642 = vmul.f32 %v346, %v626
    %v643 = vmul.f32 %v595, %v595
    %v644 = vmul.f32 %v596, %v596
    %v645 = vmul.f32 %v597, %v597
    %v646 = vmul.f32 %v598, %v598
    %v647 = vmul.f32 %v599, %v599
    %v648 = vmul.f32 %v600, %v600
    %v649 = vmul.f32 %v601, %v601
    %v650 = vmul.f32 %v602, %v602
    %v651 = vmul.f32 %v603, %v603
    %v652 = vmul.f32 %v604, %v604
    %v653 = vmul.f32 %v605, %v605
    %v654 = vmul.f32 %v606, %v606
    %v655 = vmul.f32 %v607, %v607
    %v656 = vmul.f32 %v608, %v608
    %v657 = vmul.f32 %v609, %v609
    %v658 = vmul.f32 %v610, %v610
    %v659 = vmul.f32 %v163, %v643
    %v660 = vmul.f32 %v164, %v644
    %v661 = vmul.f32 %v165, %v645
    %v662 = vmul.f32 %v166, %v646
    %v663 = vmul.f32 %v167, %v647
    %v664 = vmul.f32 %v168, %v648
    %v665 = vmul.f32 %v169, %v649
    %v666 = vmul.f32 %v170, %v650
    %v667 = vmul.f32 %v171, %v651
    %v668 = vmul.f32 %v172, %v652
    %v669 = vmul.f32 %v173, %v653
    %v670 = vmul.f32 %v174, %v654
    %v671 = vmul.f32 %v175, %v655
    %v672 = vmul.f32 %v176, %v656
    %v673 = vmul.f32 %v177, %v657
    %v674 = vmul.f32 %v178, %v658
    %v675 = vadd.f32 %v627, %v659
    %v676 = vadd.f32 %v628, %v660
    %v677 = vadd.f32 %v629, %v661
    %v678 = vadd.f32 %v630, %v662
    %v679 = vadd.f32 %v631, %v663
    %v680 = vadd.f32 %v632, %v664
    %v681 = vadd.f32 %v633, %v665
    %v682 = vadd.f32 %v634, %v666
    %v683 = vadd.f32 %v635, %v667
    %v684 = vadd.f32 %v636, %v668
    %v685 = vadd.f32 %v637, %v669
    %v686 = vadd.f32 %v638, %v670
    %v687 = vadd.f32 %v639, %v671
    %v688 = vadd.f32 %v640, %v672
    %v689 = vadd.f32 %v641, %v673
    %v690 = vadd.f32 %v642, %v674
    %v691 = vmul.f32 %v511, %v595
    %v692 = vmul.f32 %v512, %v596
    %v693 = vmul.f32 %v513, %v597
    %v694 = vmul.f32 %v514, %v598
    %v695 = vmul.f32 %v515, %v599
    %v696 = vmul.f32 %v516, %v600
    %v697 = vmul.f32 %v517, %v601
    %v698 = vmul.f32 %v518, %v602
    %v699 = vmul.f32 %v519, %v603
    %v700 = vmul.f32 %v520, %v604
    %v701 = vmul.f32 %v521, %v605
    %v702 = vmul.f32 %v522, %v606
    %v703 = vmul.f32 %v523, %v607
    %v704 = vmul.f32 %v524, %v608
    %v705 = vmul.f32 %v525, %v609
    %v706 = vmul.f32 %v526, %v610
    %v707 = vmul.f32 %v247, %v691
    %v708 = vmul.f32 %v248, %v692
    %v709 = vmul.f32 %v249, %v693
    %v710 = vmul.f32 %v250, %v694
    %v711 = vmul.f32 %v251, %v695
    %v712 = vmul.f32 %v252, %v696
    %v713 = vmul.f32 %v253, %v697
    %v714 = vmul.f32 %v254, %v698
    %v715 = vmul.f32 %v255, %v699
    %v716 = vmul.f32 %v256, %v700
    %v717 = vmul.f32 %v257, %v701
    %v718 = vmul.f32 %v258, %v702
    %v719 = vmul.f32 %v259, %v703
    %v720 = vmul.f32 %v260, %v704
    %v721 = vmul.f32 %v261, %v705
    %v722 = vmul.f32 %v262, %v706
    %v723 = vmul.f32 %v707, 2.0
    %v724 = vmul.f32 %v708, 2.0
    %v725 = vmul.f32 %v709, 2.0
    %v726 = vmul.f32 %v710, 2.0
    %v727 = vmul.f32 %v711, 2.0
    %v728 = vmul.f32 %v712, 2.0
    %v729 = vmul.f32 %v713, 2.0
    %v730 = vmul.f32 %v714, 2.0
    %v731 = vmul.f32 %v715, 2.0
    %v732 = vmul.f32 %v716, 2.0
    %v733 = vmul.f32 %v717, 2.0
    %v734 = vmul.f32 %v718, 2.0
    %v735 = vmul.f32 %v719, 2.0
    %v736 = vmul.f32 %v720, 2.0
    %v737 = vmul.f32 %v721, 2.0
    %v738 = vmul.f32 %v722, 2.0
    %v739 = vsub.f32 %v675, %v723
    %v740 = vsub.f32 %v676, %v724
    %v741 = vsub.f32 %v677, %v725
    %v742 = vsub.f32 %v678, %v726
    %v743 = vsub.f32 %v679, %v727
    %v744 = vsub.f32 %v680, %v728
    %v745 = vsub.f32 %v681, %v729
    %v746 = vsub.f32 %v682, %v730
    %v747 = vsub.f32 %v683, %v731
    %v748 = vsub.f32 %v684, %v732
    %v749 = vsub.f32 %v685, %v733
    %v750 = vsub.f32 %v686, %v734
    %v751 = vsub.f32 %v687, %v735
    %v752 = vsub.f32 %v688, %v736
    %v753 = vsub.f32 %v689, %v737
    %v754 = vsub.f32 %v690, %v738
    %v755 = vmul.f32 %v739, %v427
    %v756 = vmul.f32 %v740, %v428
    %v757 = vmul.f32 %v741, %v429
    %v758 = vmul.f32 %v742, %v430
    %v759 = vmul.f32 %v743, %v431
    %v760 = vmul.f32 %v744, %v432
    %v761 = vmul.f32 %v745, %v433
    %v762 = vmul.f32 %v746, %v434
    %v763 = vmul.f32 %v747, %v435
    %v764 = vmul.f32 %v748, %v436
    %v765 = vmul.f32 %v749, %v437
    %v766 = vmul.f32 %v750, %v438
    %v767 = vmul.f32 %v751, %v439
    %v768 = vmul.f32 %v752, %v440
    %v769 = vmul.f32 %v753, %v441
    %v770 = vmul.f32 %v754, %v442
    %v771 = vmul.f32 %v755, -0.125
    %v772 = vmul.f32 %v756, -0.125
    %v773 = vmul.f32 %v757, -0.125
    %v774 = vmul.f32 %v758, -0.125
    %v775 = vmul.f32 %v759, -0.125
    %v776 = vmul.f32 %v760, -0.125
    %v777 = vmul.f32 %v761, -0.125
    %v778 = vmul.f32 %v762, -0.125
    %v779 = vmul.f32 %v763, -0.125
    %v780 = vmul.f32 %v764, -0.125
    %v781 = vmul.f32 %v765, -0.125
    %v782 = vmul.f32 %v766, -0.125
    %v783 = vmul.f32 %v767, -0.125
    %v784 = vmul.f32 %v768, -0.125
    %v785 = vmul.f32 %v769, -0.125
    %v786 = vmul.f32 %v770, -0.125
    %v787 = vmul.f32 %v771, 1.442695
    %v788 = vpow.pop %v787
    %v789 = vmul.f32 %v772, 1.442695
    %v790 = vpow.pop %v789
    %v791 = vmul.f32 %v773, 1.442695
    %v792 = vpow.pop %v791
    %v793 = vmul.f32 %v774, 1.442695
    %v794 = vpow.pop %v793
    %v795 = vmul.f32 %v775, 1.442695
    %v796 = vpow.pop %v795
    %v797 = vmul.f32 %v776, 1.442695
    %v798 = vpow.pop %v797
    %v799 = vmul.f32 %v777, 1.442695
    %v800 = vpow.pop %v799
    %v801 = vmul.f32 %v778, 1.442695
    %v802 = vpow.pop %v801
    %v803 = vmul.f32 %v779, 1.442695
    %v804 = vpow.pop %v803
    %v805 = vmul.f32 %v780, 1.442695
    %v806 = vpow.pop %v805
    %v807 = vmul.f32 %v781, 1.442695
    %v808 = vpow.pop %v807
    %v809 = vmul.f32 %v782, 1.442695
    %v810 = vpow.pop %v809
    %v811 = vmul.f32 %v783, 1.442695
    %v812 = vpow.pop %v811
    %v813 = vmul.f32 %v784, 1.442695
    %v814 = vpow.pop %v813
    %v815 = vmul.f32 %v785, 1.442695
    %v816 = vpow.pop %v815
    %v817 = vmul.f32 %v786, 1.442695
    %v818 = vpow.pop %v817
    %819 = vset.pattern.permute.xlu0 5
    %820 = vperm.xlu0 %819, %v63
    %v821 = vpop.permute.xlu0 %820
    %823 = vset.pattern.permute.xlu0 5
    %824 = vperm.xlu0 %823, %v64
    %v825 = vpop.permute.xlu0 %824
    %827 = vset.pattern.permute.xlu0 5
    %828 = vperm.xlu0 %827, %v65
    %v829 = vpop.permute.xlu0 %828
    %831 = vset.pattern.permute.xlu0 5
    %832 = vperm.xlu0 %831, %v66
    %v833 = vpop.permute.xlu0 %832
    %835 = vset.pattern.permute.xlu0 5
    %836 = vperm.xlu0 %835, %v67
    %v837 = vpop.permute.xlu0 %836
    %839 = vset.pattern.permute.xlu0 5
    %840 = vperm.xlu0 %839, %v68
    %v841 = vpop.permute.xlu0 %840
    %843 = vset.pattern.permute.xlu0 5
    %844 = vperm.xlu0 %843, %v69
    %v845 = vpop.permute.xlu0 %844
    %847 = vset.pattern.permute.xlu0 5
    %848 = vperm.xlu0 %847, %v70
    %v849 = vpop.permute.xlu0 %848
    %851 = vset.pattern.permute.xlu0 5
    %852 = vperm.xlu0 %851, %v71
    %v853 = vpop.permute.xlu0 %852
    %855 = vset.pattern.permute.xlu0 5
    %856 = vperm.xlu0 %855, %v72
    %v857 = vpop.permute.xlu0 %856
    %859 = vset.pattern.permute.xlu0 5
    %860 = vperm.xlu0 %859, %v73
    %v861 = vpop.permute.xlu0 %860
    %863 = vset.pattern.permute.xlu0 5
    %864 = vperm.xlu0 %863, %v74
    %v865 = vpop.permute.xlu0 %864
    %867 = vset.pattern.permute.xlu0 5
    %868 = vperm.xlu0 %867, %v75
    %v869 = vpop.permute.xlu0 %868
    %871 = vset.pattern.permute.xlu0 5
    %872 = vperm.xlu0 %871, %v76
    %v873 = vpop.permute.xlu0 %872
    %875 = vset.pattern.permute.xlu0 5
    %876 = vperm.xlu0 %875, %v77
    %v877 = vpop.permute.xlu0 %876
    %879 = vset.pattern.permute.xlu0 5
    %880 = vperm.xlu0 %879, %v78
    %v881 = vpop.permute.xlu0 %880
    %v883 = vlaneseq
    %v884 = vshrl.u32 %v883, 7
    %v885 = vsub.s32 0, %v884
    %v886 = vrot.slane %v62, %v885
    %v887 = vmul.f32 %v821, %v886
    %v888 = vmul.f32 %v825, %v886
    %v889 = vmul.f32 %v829, %v886
    %v890 = vmul.f32 %v833, %v886
    %v891 = vmul.f32 %v837, %v886
    %v892 = vmul.f32 %v841, %v886
    %v893 = vmul.f32 %v845, %v886
    %v894 = vmul.f32 %v849, %v886
    %v895 = vmul.f32 %v853, %v886
    %v896 = vmul.f32 %v857, %v886
    %v897 = vmul.f32 %v861, %v886
    %v898 = vmul.f32 %v865, %v886
    %v899 = vmul.f32 %v869, %v886
    %v900 = vmul.f32 %v873, %v886
    %v901 = vmul.f32 %v877, %v886
    %v902 = vmul.f32 %v881, %v886
    %v903 = vmul.f32 %v887, %v411
    %v904 = vmul.f32 %v888, %v412
    %v905 = vmul.f32 %v889, %v413
    %v906 = vmul.f32 %v890, %v414
    %v907 = vmul.f32 %v891, %v415
    %v908 = vmul.f32 %v892, %v416
    %v909 = vmul.f32 %v893, %v417
    %v910 = vmul.f32 %v894, %v418
    %v911 = vmul.f32 %v895, %v419
    %v912 = vmul.f32 %v896, %v420
    %v913 = vmul.f32 %v897, %v421
    %v914 = vmul.f32 %v898, %v422
    %v915 = vmul.f32 %v899, %v423
    %v916 = vmul.f32 %v900, %v424
    %v917 = vmul.f32 %v901, %v425
    %v918 = vmul.f32 %v902, %v426
    %v919 = vmul.f32 %v788, %v903
    %v920 = vmul.f32 %v790, %v904
    %v921 = vmul.f32 %v792, %v905
    %v922 = vmul.f32 %v794, %v906
    %v923 = vmul.f32 %v796, %v907
    %v924 = vmul.f32 %v798, %v908
    %v925 = vmul.f32 %v800, %v909
    %v926 = vmul.f32 %v802, %v910
    %v927 = vmul.f32 %v804, %v911
    %v928 = vmul.f32 %v806, %v912
    %v929 = vmul.f32 %v808, %v913
    %v930 = vmul.f32 %v810, %v914
    %v931 = vmul.f32 %v812, %v915
    %v932 = vmul.f32 %v814, %v916
    %v933 = vmul.f32 %v816, %v917
    %v934 = vmul.f32 %v818, %v918
    %v935 = vsub.f32 %v919, 0.6065
    %v936 = vsub.f32 %v920, 0.6065
    %v937 = vsub.f32 %v921, 0.6065
    %v938 = vsub.f32 %v922, 0.6065
    %v939 = vsub.f32 %v923, 0.6065
    %v940 = vsub.f32 %v924, 0.6065
    %v941 = vsub.f32 %v925, 0.6065
    %v942 = vsub.f32 %v926, 0.6065
    %v943 = vsub.f32 %v927, 0.6065
    %v944 = vsub.f32 %v928, 0.6065
    %v945 = vsub.f32 %v929, 0.6065
    %v946 = vsub.f32 %v930, 0.6065
    %v947 = vsub.f32 %v931, 0.6065
    %v948 = vsub.f32 %v932, 0.6065
    %v949 = vsub.f32 %v933, 0.6065
    %v950 = vsub.f32 %v934, 0.6065
    %v951 = vmul.f32 %v935, 0.01
    %v952 = vmul.f32 %v936, 0.01
    %v953 = vmul.f32 %v937, 0.01
    %v954 = vmul.f32 %v938, 0.01
    %v955 = vmul.f32 %v939, 0.01
    %v956 = vmul.f32 %v940, 0.01
    %v957 = vmul.f32 %v941, 0.01
    %v958 = vmul.f32 %v942, 0.01
    %v959 = vmul.f32 %v943, 0.01
    %v960 = vmul.f32 %v944, 0.01
    %v961 = vmul.f32 %v945, 0.01
    %v962 = vmul.f32 %v946, 0.01
    %v963 = vmul.f32 %v947, 0.01
    %v964 = vmul.f32 %v948, 0.01
    %v965 = vmul.f32 %v949, 0.01
    %v966 = vmul.f32 %v950, 0.01
    %v967 = vmax.f32 %v935, %v951
    %v968 = vmax.f32 %v936, %v952
    %v969 = vmax.f32 %v937, %v953
    %v970 = vmax.f32 %v938, %v954
    %v971 = vmax.f32 %v939, %v955
    %v972 = vmax.f32 %v940, %v956
    %v973 = vmax.f32 %v941, %v957
    %v974 = vmax.f32 %v942, %v958
    %v975 = vmax.f32 %v943, %v959
    %v976 = vmax.f32 %v944, %v960
    %v977 = vmax.f32 %v945, %v961
    %v978 = vmax.f32 %v946, %v962
    %v979 = vmax.f32 %v947, %v963
    %v980 = vmax.f32 %v948, %v964
    %v981 = vmax.f32 %v949, %v965
    %v982 = vmax.f32 %v950, %v966
    %v983 = vadd.f32 %v967, 0.006065
    %v984 = vadd.f32 %v968, 0.006065
    %v985 = vadd.f32 %v969, 0.006065
    %v986 = vadd.f32 %v970, 0.006065
    %v987 = vadd.f32 %v971, 0.006065
    %v988 = vadd.f32 %v972, 0.006065
    %v989 = vadd.f32 %v973, 0.006065
    %v990 = vadd.f32 %v974, 0.006065
    %v991 = vadd.f32 %v975, 0.006065
    %v992 = vadd.f32 %v976, 0.006065
    %v993 = vadd.f32 %v977, 0.006065
    %v994 = vadd.f32 %v978, 0.006065
    %v995 = vadd.f32 %v979, 0.006065
    %v996 = vadd.f32 %v980, 0.006065
    %v997 = vadd.f32 %v981, 0.006065
    %v998 = vadd.f32 %v982, 0.006065
    %v999 = vadd.f32 %v983, %v984
    %v1000 = vadd.f32 %v999, %v985
    %v1001 = vadd.f32 %v1000, %v986
    %v1002 = vadd.f32 %v1001, %v987
    %v1003 = vadd.f32 %v1002, %v988
    %v1004 = vadd.f32 %v1003, %v989
    %v1005 = vadd.f32 %v1004, %v990
    %v1006 = vadd.f32 %v1005, %v991
    %v1007 = vadd.f32 %v1006, %v992
    %v1008 = vadd.f32 %v1007, %v993
    %v1009 = vadd.f32 %v1008, %v994
    %v1010 = vadd.f32 %v1009, %v995
    %v1011 = vadd.f32 %v1010, %v996
    %v1012 = vadd.f32 %v1011, %v997
    %v1013 = vadd.f32 %v1012, %v998
    %1014 = vadd.xlane.f32.xlu0 %v1013
    %v1015 = vpop.xlane.xlu0 %1014
    %v1016 = vrot.slane %v1015, 4
    %v1017 = vadd.f32 %v1015, %v1016
    %v1018 = vrot.slane %v1017, 2
    %v1019 = vadd.f32 %v1017, %v1018
    %v1020 = vrot.slane %v1019, 1
    %v1021 = vadd.f32 %v1019, %v1020
    %s1022 = vtos %v1021
    %s1023 = sadd.f32 %s1022, 0.0
    %p1024 = scmp.eq.s32.totalorder %s55, %s56
    // Predicated region
    $region10: #{tpu_custom_call.1} parent=1 // pred_check
      %p1025 = pneg %p1024
    $region11: #{tpu_custom_call.1} parent=1 // pred_check_branch
      %1027 = sbr.rel (%p1025) target = $region13
    $region12: #{tpu_custom_call.1} parent=1 // pred_region
      %s1028 = smul.u32 %s55, 128
      %s1029 = ssub.s32 16, %s1028
      %p1030 = scmp.gt.s32.totalorder %s1029, 0
      %s1031 = scalar_select %p1030, %s1029, 0
      %p1032 = scmp.lt.s32.totalorder %s1031, 128
      %s1033 = scalar_select %p1032, %s1031, 128
      %s1034 = scvt.s32.f32 %s1033
      %s1035 = smul.f32 %s1034, 0.399565
      %s1036 = ssub.f32 %s1023, %s1035
      %v1037 = vstv %s1036
      %1038 = vst [vmem:[#allocation5] sm:$0xff] %v1037
    $region13: #{tpu_custom_call.1} parent=1 // pred_fallthru
      _
    %p1039 = scmp.ne.s32.totalorder %s55, %s56
    // Predicated region
    $region14: #{tpu_custom_call.1} parent=1 // pred_check
      %p1040 = pneg %p1039
    $region15: #{tpu_custom_call.1} parent=1 // pred_check_branch
      %1042 = sbr.rel (%p1040) target = $region17
    $region16: #{tpu_custom_call.1} parent=1 // pred_region
      %s1043 = smul.f32 %s1023, 2.0
      %v1044 = vstv %s1043
      %1045 = vst [vmem:[#allocation5] sm:$0xff] %v1044
    $region17: #{tpu_custom_call.1} parent=1 // pred_fallthru
      _
    // Predicated region
    $region18: #{tpu_custom_call.1} parent=1 // pred_check
      _
    $region19: #{tpu_custom_call.1} parent=1 // pred_check_branch
      %1047 = sbr.rel (0) target = $region21
    $region20: #{tpu_custom_call.1} parent=1 // pred_region
      %s1049 = ssub.s32 128, 128
      %1050 = vsyncadd [#allocation6], %s1049
      %s1052 = sshll.u32 [#allocation5], 4
      %s1053 = int_to_ptr.vmem [resolvable:$true] %s1052
      %1055 = dma.vmem_to_hbm [thread:$0]  %s1053, 128, %s4, [#allocation6]
    $region21: #{tpu_custom_call.1} parent=1 // pred_fallthru
      _
    // Predicated region
    $region22: #{tpu_custom_call.1} parent=1 // pred_check
      _
    $region23: #{tpu_custom_call.1} parent=1 // pred_check_branch
      %1057 = sbr.rel (0) target = $region25
    $region24: #{tpu_custom_call.1} parent=1 // pred_region
      %1058 = dma.done [#allocation6], 128
    $region25: #{tpu_custom_call.1} parent=1 // pred_fallthru
      _
    %1059 = vsyncpa [#allocation6], 1

</llo_original>
